<compile_context>
chip_gen: v7x
topology: tpu7x:2x2x1
jax: 0.10.0
libtpu: 0.0.40
codegen_flags: <defaults>
</compile_context>

<pallas_src>
import jax
import jax.numpy as jnp
from jax.experimental import pallas as pl
from jax.experimental.pallas import tpu as pltpu

G = -9.81        # gravitational acceleration used by the reference module
LANES = 128      # f32 lane width
TILE_ROWS = 2048 # 2048 * 128 * 4 B = 1 MiB per block (in + out, double-buffered ≈ 4 MiB VMEM)


def pendulum_kernel(x_ref, o_ref):
    # x: (tile_rows, 128), lanes interleaved [theta_0, v_0, theta_1, v_1, ...]
    x = x_ref[...]
    lane = jax.lax.broadcasted_iota(jnp.int32, x.shape, dimension=1)
    is_even = (lane & 1) == 0
    # jnp.roll semantics: y[k] = x[(k - shift) mod 128]
    nb_lo = pltpu.roll(x, shift=1, axis=1)          # odd lane 2j+1 now holds theta_j
    nb_hi = pltpu.roll(x, shift=LANES - 1, axis=1)  # even lane 2j  now holds v_j
    # even output lanes -> v, odd output lanes -> g * sin(theta)
    # (sin over the full block is tolerated: kernel is HBM-bound; EUP has slack.)
    o_ref[...] = jnp.where(is_even, nb_hi, G * jnp.sin(nb_lo)).astype(o_ref.dtype)


def _pendulum_ref(state):
    theta, v = state[:, 0], state[:, 1]
    return jnp.stack([v, G * jnp.sin(theta)], axis=-1)


def pendulum_force_theta(t, state):
    """Pallas equivalent of PendulumForceTheta.forward(t, State)."""
    del t  # dynamics are time-independent (t is unused in the reference forward)
    B, C = state.shape
    assert C == 2
    total = B * C
    if total < LANES or total % LANES != 0:
        # Tiny / lane-unaligned batch: fixed kernel overhead dominates -> pure JAX.
        return _pendulum_ref(state)

    R = total // LANES
    x = state.reshape(R, LANES)  # free view of the contiguous (B, 2) buffer

    block_rows = min(R, TILE_ROWS)
    if block_rows != R:
        block_rows = max(8, (block_rows // 8) * 8)  # keep (8, 128) divisibility
    grid = (pl.cdiv(R, block_rows),)

    out = pl.pallas_call(
        pendulum_kernel,
        out_shape=jax.ShapeDtypeStruct((R, LANES), state.dtype),
        grid=grid,
        in_specs=[pl.BlockSpec((block_rows, LANES), lambda i: (i, 0))],
        out_specs=pl.BlockSpec((block_rows, LANES), lambda i: (i, 0)),
        compiler_params=pltpu.CompilerParams(dimension_semantics=("parallel",)),
    )(x)
    return out.reshape(B, C)


if __name__ == "__main__":
    key = jax.random.PRNGKey(0)
    t = jnp.float32(0.0)

    # Main test: lane-aligned batch that exercises the Pallas path.
    B = 512
    state = jax.random.normal(key, (B, 2), dtype=jnp.float32)  # [:,0]=theta, [:,1]=v
    out = jax.block_until_ready(pendulum_force_theta(t, state))
    ref = _pendulum_ref(state)
    assert out.shape == (B, 2) and out.dtype == jnp.float32
    assert jnp.allclose(out, ref, atol=1e-5, rtol=1e-5)

    # Tiny-batch fallback path (pure JAX, per perf review).
    state_small = jax.random.normal(jax.random.PRNGKey(1), (8, 2), dtype=jnp.float32)
    out_small = jax.block_until_ready(pendulum_force_theta(t, state_small))
    assert jnp.allclose(out_small, _pendulum_ref(state_small), atol=1e-5, rtol=1e-5)

    print("KERNEL_OK")
</pallas_src>

<mosaic_0001>
module attributes {stable_mosaic.version = 11 : i64} {
  func.func @pendulum_kernel(%arg0: i32, %arg1: memref<8x128xf32, #tpu.memory_space<vmem>>, %arg2: memref<8x128xf32, #tpu.memory_space<vmem>>) attributes {dimension_semantics = [#tpu.dimension_semantics<parallel>], iteration_bounds = array<i64: 1>, scalar_prefetch = 0 : i64, scratch_operands = 0 : i64, tpu.core_type = #tpu.core_type<tc>, window_params = [{transform_indices = @transform_0, window_bounds = array<i64: 8, 128>}, {transform_indices = @transform_1, window_bounds = array<i64: 8, 128>}]} {
    %c0 = arith.constant 0 : index
    %c0_0 = arith.constant 0 : index
    %0 = vector.load %arg1[%c0, %c0_0] : memref<8x128xf32, #tpu.memory_space<vmem>>, vector<8x128xf32>
    %1 = tpu.iota {dimensions = array<i32: 1>} : vector<8x128xi32>
    %c1_i32 = arith.constant 1 : i32
    %2 = vector.broadcast %c1_i32 : i32 to vector<8x128xi32>
    %3 = arith.andi %1, %2 : vector<8x128xi32>
    %c0_i32 = arith.constant 0 : i32
    %4 = vector.broadcast %c0_i32 : i32 to vector<8x128xi32>
    %5 = arith.cmpi eq, %3, %4 : vector<8x128xi32>
    %c1_i32_1 = arith.constant 1 : i32
    %6 = tpu.dynamic_rotate %0 by %c1_i32_1 dim 1 : vector<8x128xf32>, i32 -> vector<8x128xf32>
    %c127_i32 = arith.constant 127 : i32
    %7 = tpu.dynamic_rotate %0 by %c127_i32 dim 1 : vector<8x128xf32>, i32 -> vector<8x128xf32>
    %8 = math.sin %6 : vector<8x128xf32>
    %cst = arith.constant -9.810000e+00 : f32
    %9 = vector.broadcast %cst : f32 to vector<8x128xf32>
    %10 = arith.mulf %9, %8 : vector<8x128xf32>
    %11 = arith.select %5, %7, %10 : vector<8x128xi1>, vector<8x128xf32>
    %c0_2 = arith.constant 0 : index
    %c0_3 = arith.constant 0 : index
    %12 = vector.load %arg2[%c0_2, %c0_3] : memref<8x128xf32, #tpu.memory_space<vmem>>, vector<8x128xf32>
    tpu.vector_store %arg2[%c0_2, %c0_3], %11 {strides = array<i32>} : memref<8x128xf32, #tpu.memory_space<vmem>>, vector<8x128xf32>,
    return
  }
  func.func @transform_0(%arg0: i32) -> (i32, i32) {
    %c0_i32 = arith.constant 0 : i32
    %c0_i32_0 = arith.constant 0 : i32
    return %arg0, %c0_i32 : i32, i32
  }
  func.func @transform_1(%arg0: i32) -> (i32, i32) {
    %c0_i32 = arith.constant 0 : i32
    %c0_i32_0 = arith.constant 0 : i32
    return %arg0, %c0_i32 : i32, i32
  }
}

</mosaic_0001>

<llo_original>
// kernel: tpu_custom_call.1
$region0: #{tpu_custom_call.1}
  #allocation0 [shape = 'u32[]', space=smem, size = 0x4, offset = 0x4, fixed_abs, tag = 'smem constant byte address 0x4 - core index']
  #allocation1 [shape = 'u32[144,128]{1,0:T(1,128)}', space=vmem, size = 0x12000, scoped, tag = 'internal scratch']
  %s0 = inlined_call_operand.hbm [shape: f32[8,128], index: 0, kind: input, shape index: {}]
  %s1 = inlined_call_operand.hbm [shape: f32[8,128], index: 1, kind: output, shape index: {}]
  %s2 = sld [smem:[#allocation0]]
  $region18: #{tpu_custom_call.1} parent=0
    _
  %s4 = ssub.s32 1, %s2
  %s5 = scalar_select 0, %s4, %s2
  $region1: #{tpu_custom_call.1} parent=0
    #allocation2 [shape = 'u8[4096]{0}', space=vmem, size = 0x1000, scoped, tag = 'input window, operand 0, single buffered']
    #allocation3 [shape = 's32[1]{0}', space=sflag, size = 0x4, scoped, tag = 'scoped memory for tpu_custom_call.1']
    #allocation4 [shape = 's32[1]{0}', space=sflag, size = 0x4, scoped, tag = 'scoped memory for tpu_custom_call.1']
    #allocation5 [shape = 'u8[4096]{0}', space=vmem, size = 0x1000, scoped, tag = 'output window, operand 0, single buffered']
    %6 = vsyncpa [#allocation3], 0
    %7 = vsyncpa [#allocation4], 0
    // Predicated region
    $region2: #{tpu_custom_call.1} parent=1 // pred_check
      _
    $region3: #{tpu_custom_call.1} parent=1 // pred_check_branch
      %9 = sbr.rel (0) target = $region5
    $region4: #{tpu_custom_call.1} parent=1 // pred_region
      %s11 = ssub.s32 128, 128
      %12 = vsyncadd [#allocation3], %s11
      %s14 = sshll.u32 [#allocation2], 4
      %s15 = int_to_ptr.vmem [resolvable:$true] %s14
      %17 = dma.hbm_to_vmem [thread:$0]  %s0, 128, %s15, [#allocation3]
    $region5: #{tpu_custom_call.1} parent=1 // pred_fallthru
      _
    // Predicated region
    $region6: #{tpu_custom_call.1} parent=1 // pred_check
      _
    $region7: #{tpu_custom_call.1} parent=1 // pred_check_branch
      %19 = sbr.rel (0) target = $region9
    $region8: #{tpu_custom_call.1} parent=1 // pred_region
      %20 = dma.done [#allocation3], 128
    $region9: #{tpu_custom_call.1} parent=1 // pred_fallthru
      _
    %v21 = vld [vmem:[#allocation2] sm:$0xff]
    %v22 = vlaneseq
    %v23 = vand.u32 %v22, 127
    %v24 = vand.u32 %v23, 1
    %vm25 = vcmp.eq.s32.totalorder %v24, 0
    %26 = vrot.lane.b32.xlu0 %v21, 1
    %v27 = vpop.permute.xlu0 %26
    %28 = vrot.lane.b32.xlu0 %v21, 127
    %v29 = vpop.permute.xlu0 %28
    %v30 = vand.u32 2147483647, %v27
    %vm31 = vcmp.le.f32.partialorder %v30, 0.7853982
    %vm32 = vcmp.lt.s32.totalorder %v27, 0
    %v33 = vand.u32 %v27, 2139095040
    %v34 = vshrl.u32 %v33, 23
    %v35 = vsub.s32 %v34, 127
    %v36 = vand.u32 2147483647, %v27
    %v37 = vand.u32 %v36, 8388607
    %v38 = vor.u32 %v37, 8388608
    %v39 = vsub.s32 0, %v38
    %v40 = vadd.s32 %v35, 1
    %vm41 = vcmp.gt.s32.totalorder %v40, 0
    %v42 = vsel %vm41, %v40, 0
    %v43 = vshrl.u32 %v42, 5
    %v44 = vand.u32 %v42, 31
    %v45 = vsub.s32 32, %v44
    %v46 = vshrl.u32 683565275, %v45
    %v47 = vshll.u32 683565275, %v44
    %v48 = vshrl.u32 2475754826, %v45
    %v49 = vor.u32 %v47, %v48
    %v50 = vshll.u32 2475754826, %v44
    %v51 = vshrl.u32 2131351028, %v45
    %v52 = vor.u32 %v50, %v51
    %v53 = vshll.u32 2131351028, %v44
    %v54 = vshrl.u32 2102212464, %v45
    %v55 = vor.u32 %v53, %v54
    %v56 = vshll.u32 2102212464, %v44
    %v57 = vshrl.u32 920167782, %v45
    %v58 = vor.u32 %v56, %v57
    %v59 = vshll.u32 920167782, %v44
    %v60 = vshrl.u32 1326507024, %v45
    %v61 = vor.u32 %v59, %v60
    %vm62 = vcmp.lt.s32.totalorder %v43, 1
    %vm63 = vcmp.lt.s32.totalorder %v43, 2
    %vm64 = vcmp.lt.s32.totalorder %v43, 3
    %vm65 = vcmp.lt.s32.totalorder %v43, 4
    %v66 = vsel %vm62, %v46, %v49
    %v67 = vsel %vm65, %v55, 2102212464
    %v68 = vsel %vm64, %v52, %v67
    %v69 = vsel %vm63, %v66, %v68
    %v70 = vsel %vm62, %v49, %v52
    %v71 = vsel %vm65, %v58, 920167782
    %v72 = vsel %vm64, %v55, %v71
    %v73 = vsel %vm63, %v70, %v72
    %v74 = vsel %vm62, %v52, %v55
    %v75 = vsel %vm65, %v61, 1326507024
    %v76 = vsel %vm64, %v58, %v75
    %v77 = vsel %vm63, %v74, %v76
    %v78 = vshll.u32 %v38, 8
    %v79 = vmul.u32.u64.compose %v78, %v77
    %v80 = vextract.low.u32 %v79
    %v81 = vextract.high.u32 %v79
    %v82 = vmul.u32.u64.compose %v78, %v73
    %v83 = vextract.low.u32 %v82
    %v84 = vextract.high.u32 %v82
    %v85 = vmul.u32 %v78, %v69
    %v86 = vadd.s32 %v81, %v83
    %vm87 = vc.u32 %v81, %v83
    %v88 = vadd.s32 %v84, 1
    %v89 = vsel %vm87, %v88, %v84
    %v90 = vadd.s32 %v85, %v89
    %v91 = vadd.s32 %v90, 536870912
    %v92 = vshrl.u32 %v91, 30
    %v93 = vshll.u32 %v92, 30
    %v94 = vsub.s32 %v90, %v93
    %vm95 = vcmp.lt.s32.totalorder %v94, 0
    %v96 = vsub.s32 0, %v94
    %v97 = vsel %vm95, %v96, %v94
    %v98 = vclz %v97
    %v99 = vsub.s32 %v98, 2
    %vm100 = vcmp.gt.s32.totalorder 0, %v99
    %v101 = vsel %vm100, 0, %v99
    %v102 = vsub.s32 32, %v101
    %v103 = vshll.u32 %v94, %v101
    %v104 = vshrl.u32 %v86, %v102
    %v105 = vor.u32 %v103, %v104
    %v106 = vsub.s32 4294967266, %v101
    %v107 = vadd.s32 %v106, 127
    %v108 = vshll.u32 %v107, 23
    %v109 = vor.u32 4788187, %v108
    %v110 = vand.u32 2147483647, %v109
    %v112 = vcvt.s32.f32 %v105
    %v113 = vmul.f32 %v112, %v110
    %v114 = vxor.u32 %v113, 2147483648
    %v115 = vsel %vm32, %v114, %v113
    %v116 = vsub.s32 4, %v92
    %v117 = vsel %vm32, %v116, %v92
    %v118 = vsel %vm31, %v27, %v115
    %v119 = vsel %vm31, 0, %v117
    %v120 = vcosq.f32.pop %v118
    %v121 = vsinq.f32.pop %v118
    %vm122 = vweird.f32 %v27
    %v123 = vadd.s32 %v119, 3
    %v124 = vand.u32 %v123, 3
    %vm125 = vcmp.lt.s32.totalorder %v124, 2
    %vm126 = vcmp.eq.s32.totalorder %v124, 0
    %v127 = vxor.u32 %v121, 2147483648
    %v128 = vsel %vm126, %v120, %v127
    %vm129 = vcmp.eq.s32.totalorder %v124, 2
    %v130 = vxor.u32 %v120, 2147483648
    %v131 = vsel %vm129, %v130, %v121
    %v132 = vsel %vm125, %v128, %v131
    %v133 = vsel %vm122, nan, %v132
    %v134 = vmul.f32 %v133, -9.81
    %v135 = vsel %vm25, %v29, %v134
    %136 = vst [vmem:[#allocation5] sm:$0xff] %v135
    // Predicated region
    $region10: #{tpu_custom_call.1} parent=1 // pred_check
      _
    $region11: #{tpu_custom_call.1} parent=1 // pred_check_branch
      %138 = sbr.rel (0) target = $region13
    $region12: #{tpu_custom_call.1} parent=1 // pred_region
      %s140 = ssub.s32 128, 128
      %141 = vsyncadd [#allocation4], %s140
      %s143 = sshll.u32 [#allocation5], 4
      %s144 = int_to_ptr.vmem [resolvable:$true] %s143
      %146 = dma.vmem_to_hbm [thread:$0]  %s144, 128, %s1, [#allocation4]
    $region13: #{tpu_custom_call.1} parent=1 // pred_fallthru
      _
    // Predicated region
    $region14: #{tpu_custom_call.1} parent=1 // pred_check
      _
    $region15: #{tpu_custom_call.1} parent=1 // pred_check_branch
      %148 = sbr.rel (0) target = $region17
    $region16: #{tpu_custom_call.1} parent=1 // pred_region
      %149 = dma.done [#allocation4], 128
    $region17: #{tpu_custom_call.1} parent=1 // pred_fallthru
      _
    %150 = vsyncpa [#allocation3], 1
    %151 = vsyncpa [#allocation4], 1

</llo_original>
